<compile_context>
chip_gen: v5e
topology: v5e:2x2
jax: 0.10.0
libtpu: 0.0.40
codegen_flags: <defaults>
</compile_context>

<pallas_src>
import jax
import jax.numpy as jnp
from jax.experimental import pallas as pl
from jax.experimental.pallas import tpu as pltpu


def _scale_kernel(scale_ref, x_ref, o_ref):
    # scale_ref: (1,) f32 in SMEM.  x_ref / o_ref: (block_rows, lanes) in VMEM.
    # Multiply in f32 (scale stays f32 for precision/portability), cast back.
    o_ref[...] = (x_ref[...] * scale_ref[0]).astype(o_ref.dtype)


def _sublane_pack(dtype):
    itemsize = jnp.dtype(dtype).itemsize
    return {4: 8, 2: 16, 1: 32}.get(itemsize, 8)


def _run_scale_2d(x2d, scale_f32, *, target_block_bytes):
    rows, lanes = x2d.shape
    pack = _sublane_pack(x2d.dtype)
    itemsize = jnp.dtype(x2d.dtype).itemsize

    # ~2 MiB blocks by default -> 2x(in)+2x(out) double-buffered ~= 8 MiB,
    # comfortably below v5e's 16 MiB default scoped-VMEM limit.
    block_rows = max(pack,
                     (target_block_bytes // (lanes * itemsize)) // pack * pack)

    if rows <= block_rows:
        if rows >= 2 * pack:
            # Guarantee >= 2 row blocks so the "parallel" axis can actually
            # split across v7x's 2 TensorCores.
            block_rows = max(pack, (rows // 2) // pack * pack)
        else:
            # Full-extent block (always a legal BlockSpec, even if rows < 8).
            block_rows = rows
    # else: rows > block_rows  ->  grid length >= 2 automatically.

    grid = (pl.cdiv(rows, block_rows),)

    return pl.pallas_call(
        _scale_kernel,
        out_shape=jax.ShapeDtypeStruct((rows, lanes), x2d.dtype),
        grid_spec=pltpu.PrefetchScalarGridSpec(
            num_scalar_prefetch=0,
            grid=grid,
            in_specs=[
                # scalar parameter -> SMEM, kept in f32
                pl.BlockSpec(memory_space=pltpu.MemorySpace.SMEM),
                # lane-dense input slab
                pl.BlockSpec((block_rows, lanes), lambda i: (i, 0)),
            ],
            out_specs=pl.BlockSpec((block_rows, lanes), lambda i: (i, 0)),
        ),
        compiler_params=pltpu.CompilerParams(
            dimension_semantics=("parallel",)),
    )(scale_f32, x2d)


def scale_forward(x, scale, *, target_block_bytes=2 << 20):
    """Pallas implementation of Scale.forward: out = x * scale.

    x:     arbitrary-shaped float array.
    scale: shape-(1,) array (the nn.Parameter, init 0.001 in the module).
    """
    orig_shape = x.shape
    flat = x.reshape(-1)
    n = flat.shape[0]
    scale_f32 = jnp.asarray(scale, jnp.float32).reshape(-1)[:1]

    if n == 0:
        return x

    # Fast path: choose a lane width (multiple of 128) that divides n exactly,
    # so no wrapper-side pad or output slice (each a full extra HBM copy) is
    # needed.  Partial final row-blocks are handled by the cdiv grid.
    lanes = None
    for cand in (512, 256, 128):
        if n % cand == 0:
            lanes = cand
            break

    if lanes is not None:
        out2d = _run_scale_2d(flat.reshape(n // lanes, lanes), scale_f32,
                              target_block_bytes=target_block_bytes)
        return out2d.reshape(orig_shape)

    # Ragged fallback (n not a multiple of 128): pad to a lane-dense slab.
    # TODO(synk): fuse the pad via CompilerParams(allow_input_fusion=...) or a
    # tail-only pure-JAX multiply if ragged sizes ever matter for performance.
    lanes = 128
    rows = pl.cdiv(n, lanes)
    flat = jnp.pad(flat, (0, rows * lanes - n))
    out2d = _run_scale_2d(flat.reshape(rows, lanes), scale_f32,
                          target_block_bytes=target_block_bytes)
    return out2d.reshape(-1)[:n].reshape(orig_shape)


def scale_reference(x, scale):
    """Pure-JAX reference matching the PyTorch Scale.forward."""
    return x * scale[0]


if __name__ == "__main__":
    key = jax.random.PRNGKey(0)
    k0, k1, k2, k3 = jax.random.split(key, 4)
    scale = jnp.array([0.001], jnp.float32)   # nn.Parameter(init_value=0.001)

    # Primary check: the module's typical (B, C, H, W) feature map.
    x = jax.random.normal(k0, (2, 4, 16, 16), jnp.float32)
    out = jax.block_until_ready(scale_forward(x, scale))
    ref = scale_reference(x, scale)
    assert out.shape == x.shape and out.dtype == x.dtype
    assert jnp.allclose(out, ref, atol=1e-6, rtol=1e-6)

    # Multi-block path (grid length 2, exercises the "parallel" axis split).
    x2 = jax.random.normal(k1, (2, 64, 56, 56), jnp.float32)
    out2 = jax.block_until_ready(scale_forward(x2, scale))
    assert jnp.allclose(out2, scale_reference(x2, scale), atol=1e-6, rtol=1e-6)

    # Partial final row-block path (rows not a multiple of block_rows).
    x3 = jax.random.normal(k2, (2, 3, 40, 40), jnp.float32)
    out3 = jax.block_until_ready(scale_forward(x3, scale))
    assert jnp.allclose(out3, scale_reference(x3, scale), atol=1e-6, rtol=1e-6)

    # Ragged path (element count not a multiple of 128).
    x4 = jax.random.normal(k3, (3, 5, 8, 8), jnp.float32)
    out4 = jax.block_until_ready(scale_forward(x4, scale))
    assert jnp.allclose(out4, scale_reference(x4, scale), atol=1e-6, rtol=1e-6)

    print("KERNEL_OK")
</pallas_src>

<mosaic_0001>
module attributes {stable_mosaic.version = 11 : i64} {
  func.func @_scale_kernel(%arg0: i32, %arg1: memref<1xf32, #tpu.memory_space<smem>>, %arg2: memref<4x512xf32, #tpu.memory_space<vmem>>, %arg3: memref<4x512xf32, #tpu.memory_space<vmem>>) attributes {dimension_semantics = [#tpu.dimension_semantics<parallel>], iteration_bounds = array<i64: 1>, scalar_prefetch = 0 : i64, scratch_operands = 0 : i64, tpu.core_type = #tpu.core_type<tc>, window_params = [{transform_indices = @transform_0, window_bounds = array<i64: 1>}, {transform_indices = @transform_1, window_bounds = array<i64: 4, 512>}, {transform_indices = @transform_2, window_bounds = array<i64: 4, 512>}]} {
    %c0 = arith.constant 0 : index
    %c0_0 = arith.constant 0 : index
    %0 = vector.load %arg2[%c0, %c0_0] : memref<4x512xf32, #tpu.memory_space<vmem>>, vector<4x512xf32>
    %c0_1 = arith.constant 0 : index
    %1 = memref.load %arg1[%c0_1] : memref<1xf32, #tpu.memory_space<smem>>
    %2 = vector.broadcast %1 : f32 to vector<4x512xf32>
    %3 = arith.mulf %0, %2 : vector<4x512xf32>
    %c0_2 = arith.constant 0 : index
    %c0_3 = arith.constant 0 : index
    %4 = vector.load %arg3[%c0_2, %c0_3] : memref<4x512xf32, #tpu.memory_space<vmem>>, vector<4x512xf32>
    tpu.vector_store %arg3[%c0_2, %c0_3], %3 {strides = array<i32>} : memref<4x512xf32, #tpu.memory_space<vmem>>, vector<4x512xf32>,
    return
  }
  func.func @transform_0(%arg0: i32) -> i32 {
    %c0_i32 = arith.constant 0 : i32
    %c0_i32_0 = arith.constant 0 : i32
    return %c0_i32 : i32
  }
  func.func @transform_1(%arg0: i32) -> (i32, i32) {
    %c0_i32 = arith.constant 0 : i32
    %c0_i32_0 = arith.constant 0 : i32
    return %arg0, %c0_i32 : i32, i32
  }
  func.func @transform_2(%arg0: i32) -> (i32, i32) {
    %c0_i32 = arith.constant 0 : i32
    %c0_i32_0 = arith.constant 0 : i32
    return %arg0, %c0_i32 : i32, i32
  }
}

</mosaic_0001>

<llo_original>
// kernel: tpu_custom_call.1
$region0: #{tpu_custom_call.1}
  #allocation0 [shape = 'u32[]', space=smem, size = 0x4, offset = 0x4, fixed_abs, tag = 'smem constant byte address 0x4 - core index']
  #allocation1 [shape = 'u32[72,128]{1,0:T(1,128)}', space=vmem, size = 0x9000, scoped, tag = 'internal scratch']
  #allocation2 [shape = 'f32[1]{0:T(128)S(6)}', space=smem, size = 0x200, scoped, tag = 'scoped memory for tpu_custom_call.1']
  %s0 = inlined_call_operand.<no memory space> [shape: f32[1], index: 0, kind: input, shape index: {}]
  %s1 = inlined_call_operand.hbm [shape: f32[4,512], index: 1, kind: input, shape index: {}]
  %s2 = inlined_call_operand.hbm [shape: f32[4,512], index: 2, kind: output, shape index: {}]
  %s3 = sld [smem:[#allocation0]]
  $region22: #{tpu_custom_call.1} parent=0
    _
  %s5 = ssub.s32 1, %s3
  %s6 = scalar_select 0, %s5, %s3
  %7 = sst [smem:[#allocation2]] %s0
  $region1: #{tpu_custom_call.1} parent=0
    #allocation3 [shape = 'u8[8192]{0}', space=vmem, size = 0x2000, scoped, tag = 'input window, operand 1, single buffered']
    #allocation4 [shape = 's32[1]{0}', space=sflag, size = 0x4, scoped, tag = 'scoped memory for tpu_custom_call.1']
    #allocation5 [shape = 's32[1]{0}', space=sflag, size = 0x4, scoped, tag = 'scoped memory for tpu_custom_call.1']
    #allocation6 [shape = 'u8[8192]{0}', space=vmem, size = 0x2000, scoped, tag = 'output window, operand 0, single buffered']
    %8 = vsyncpa [#allocation4], 0
    %9 = vsyncpa [#allocation5], 0
    // Predicated region
    $region2: #{tpu_custom_call.1} parent=1 // pred_check
      _
    $region3: #{tpu_custom_call.1} parent=1 // pred_check_branch
      %11 = sbr.rel (0) target = $region5
    $region4: #{tpu_custom_call.1} parent=1 // pred_region
      _
    $region5: #{tpu_custom_call.1} parent=1 // pred_fallthru
      _
    // Predicated region
    $region6: #{tpu_custom_call.1} parent=1 // pred_check
      _
    $region7: #{tpu_custom_call.1} parent=1 // pred_check_branch
      %13 = sbr.rel (0) target = $region9
    $region8: #{tpu_custom_call.1} parent=1 // pred_region
      %15 = vsyncadd [#allocation4], 0
      %s17 = sshll.u32 %s1, 4
      %s18 = int_to_ptr.hbm [resolvable:$true] %s17
      %s19 = sshll.u32 [#allocation3], 4
      %s20 = int_to_ptr.vmem [resolvable:$true] %s19
      %22 = dma.hbm_to_vmem [thread:$0]  %s18, 256, %s20, [#allocation4]
    $region9: #{tpu_custom_call.1} parent=1 // pred_fallthru
      _
    // Predicated region
    $region10: #{tpu_custom_call.1} parent=1 // pred_check
      _
    $region11: #{tpu_custom_call.1} parent=1 // pred_check_branch
      %24 = sbr.rel (0) target = $region13
    $region12: #{tpu_custom_call.1} parent=1 // pred_region
      %26 = dma.done [#allocation4], 256
    $region13: #{tpu_custom_call.1} parent=1 // pred_fallthru
      _
    %v27 = vld [vmem:[#allocation3] sm:$0xff]
    %v28 = vld [vmem:[#allocation3 + $0x8] sm:$0xff]
    %s29 = sld [smem:[#allocation2]]
    %v30 = vstv %s29
    %v31 = vmul.f32 %v27, %v30
    %v32 = vmul.f32 %v28, %v30
    %33 = vst [vmem:[#allocation6] sm:$0xff] %v31
    %34 = vst [vmem:[#allocation6 + $0x8] sm:$0xff] %v32
    // Predicated region
    $region14: #{tpu_custom_call.1} parent=1 // pred_check
      _
    $region15: #{tpu_custom_call.1} parent=1 // pred_check_branch
      %36 = sbr.rel (0) target = $region17
    $region16: #{tpu_custom_call.1} parent=1 // pred_region
      %38 = vsyncadd [#allocation5], 0
      %s40 = sshll.u32 [#allocation6], 4
      %s41 = int_to_ptr.vmem [resolvable:$true] %s40
      %s42 = sshll.u32 %s2, 4
      %s43 = int_to_ptr.hbm [resolvable:$true] %s42
      %45 = dma.vmem_to_hbm [thread:$0]  %s41, 256, %s43, [#allocation5]
    $region17: #{tpu_custom_call.1} parent=1 // pred_fallthru
      _
    // Predicated region
    $region18: #{tpu_custom_call.1} parent=1 // pred_check
      _
    $region19: #{tpu_custom_call.1} parent=1 // pred_check_branch
      %47 = sbr.rel (0) target = $region21
    $region20: #{tpu_custom_call.1} parent=1 // pred_region
      %49 = dma.done [#allocation5], 256
    $region21: #{tpu_custom_call.1} parent=1 // pred_fallthru
      _
    %50 = vsyncpa [#allocation4], 1
    %51 = vsyncpa [#allocation5], 1

</llo_original>
